<compile_context>
chip_gen: v7x
topology: tpu7x:2x2x1
jax: 0.10.0
libtpu: 0.0.40
codegen_flags: <defaults>
</compile_context>

<pallas_src>
import functools

import jax
import jax.numpy as jnp
from jax import lax
from jax.experimental import pallas as pl
from jax.experimental.pallas import tpu as pltpu

_LANE = 128
_SUBLANE = 8


def _round_up(x, m):
    return ((x + m - 1) // m) * m


def _linear_kernel_single(x_ref, w_ref, b_ref, o_ref):
    # Whole reduction in one tile: dot + bias straight to the output block.
    acc = lax.dot_general(
        x_ref[...],
        w_ref[...],
        dimension_numbers=(((1,), (1,)), ((), ())),
        preferred_element_type=jnp.float32,
    )
    o_ref[...] = (acc + b_ref[...]).astype(o_ref.dtype)


def _linear_kernel_multi(x_ref, w_ref, b_ref, o_ref, acc_ref, *,
                         n_k, td, d_total, mask_last):
    # x_ref: (tb, td)  w_ref: (n_pad, td)  b_ref: (1, n_pad)
    # o_ref: (tb, n_pad)  acc_ref: (tb, n_pad) f32
    k = pl.program_id(1)

    @pl.when(k == 0)
    def _():
        acc_ref[...] = jnp.zeros_like(acc_ref)

    x = x_ref[...]
    if mask_last:
        # Final (ragged) k tile over-reads past D: zero those columns so the
        # garbage never reaches the sum (W is zero-padded along D in HBM).
        col = k * td + lax.broadcasted_iota(jnp.int32, x.shape, 1)
        x = jnp.where(col < d_total, x, jnp.zeros_like(x))

    acc_ref[...] += lax.dot_general(
        x,
        w_ref[...],
        dimension_numbers=(((1,), (1,)), ((), ())),
        preferred_element_type=jnp.float32,
    )

    @pl.when(k == n_k - 1)
    def _():
        o_ref[...] = (acc_ref[...] + b_ref[...]).astype(o_ref.dtype)


def logistic_reg_forward(x, weight, bias, *, tile_b=2048, tile_d=1024,
                         compute_dtype=None):
    """y = x @ weight.T + bias, tiled/pipelined Pallas TPU kernel.

    x:      (B, D)
    weight: (n_class, D)   (PyTorch nn.Linear convention)
    bias:   (n_class,)
    returns (B, n_class) in x's dtype.
    """
    B, D = x.shape
    n_class = weight.shape[0]
    out_dtype = x.dtype

    if compute_dtype is not None:
        # TODO(synk): in production, cast x at its producer to avoid an extra HBM pass.
        x = x.astype(compute_dtype)
        weight = weight.astype(compute_dtype)

    # ---- Batch tiling (no padding of x) ------------------------------------
    tb = min(tile_b, _round_up(B, _SUBLANE))
    if B >= 2 * _SUBLANE:
        # Guarantee >= 2 batch tiles so the "parallel" axis can use both v7x TCs.
        tb = min(tb, _round_up(pl.cdiv(B, 2), _SUBLANE))
    tb = max(tb, _SUBLANE)
    grid_b = pl.cdiv(B, tb)

    # ---- Reduction tiling along D ------------------------------------------
    if D <= tile_d:
        td, n_k = D, 1
    else:
        td = _round_up(tile_d, _LANE)
        n_k = pl.cdiv(D, td)
    mask_last = (n_k > 1) and (D % td != 0)
    d_pad_w = D if n_k == 1 else n_k * td

    # ---- Pad only the tiny weight/bias -------------------------------------
    n_pad = _round_up(max(n_class, 1), _SUBLANE)
    wp = jnp.pad(weight, ((0, n_pad - n_class), (0, d_pad_w - D)))
    bp = jnp.pad(bias.astype(jnp.float32), (0, n_pad - n_class)).reshape(1, n_pad)

    in_itemsize = jnp.dtype(x.dtype).itemsize
    out_itemsize = jnp.dtype(out_dtype).itemsize

    # Double-buffered VMEM footprint + headroom (kept well under v7x's budget).
    footprint = 2 * (tb * td * in_itemsize
                     + n_pad * td * in_itemsize
                     + tb * n_pad * out_itemsize)
    if n_k > 1:
        footprint += tb * n_pad * 4
    vmem_limit = min(max(32 * 1024 * 1024, int(footprint * 1.25)),
                     120 * 1024 * 1024)

    cost = pl.CostEstimate(
        flops=2 * B * D * n_class,
        transcendentals=0,
        bytes_accessed=in_itemsize * (B * D + n_class * D)
        + out_itemsize * B * n_class,
    )

    if n_k == 1:
        out = pl.pallas_call(
            _linear_kernel_single,
            out_shape=jax.ShapeDtypeStruct((B, n_pad), out_dtype),
            grid_spec=pltpu.PrefetchScalarGridSpec(
                num_scalar_prefetch=0,
                grid=(grid_b,),
                in_specs=[
                    pl.BlockSpec((tb, D), lambda i: (i, 0)),        # x tile
                    pl.BlockSpec((n_pad, D), lambda i: (0, 0)),     # W (resident)
                    pl.BlockSpec((1, n_pad), lambda i: (0, 0)),     # bias (resident)
                ],
                out_specs=pl.BlockSpec((tb, n_pad), lambda i: (i, 0)),
            ),
            compiler_params=pltpu.CompilerParams(
                dimension_semantics=("parallel",),
                vmem_limit_bytes=vmem_limit,
            ),
            cost_estimate=cost,
        )(x, wp, bp)
    else:
        kernel = functools.partial(
            _linear_kernel_multi, n_k=n_k, td=td, d_total=D, mask_last=mask_last)
        out = pl.pallas_call(
            kernel,
            out_shape=jax.ShapeDtypeStruct((B, n_pad), out_dtype),
            grid_spec=pltpu.PrefetchScalarGridSpec(
                num_scalar_prefetch=0,
                grid=(grid_b, n_k),
                in_specs=[
                    pl.BlockSpec((tb, td), lambda i, k: (i, k)),     # x tile
                    pl.BlockSpec((n_pad, td), lambda i, k: (0, k)),  # W k-tile (tiny)
                    pl.BlockSpec((1, n_pad), lambda i, k: (0, 0)),   # bias (resident)
                ],
                out_specs=pl.BlockSpec((tb, n_pad), lambda i, k: (i, 0)),
                scratch_shapes=[pltpu.VMEM((tb, n_pad), jnp.float32)],
            ),
            compiler_params=pltpu.CompilerParams(
                dimension_semantics=("parallel", "arbitrary"),
                vmem_limit_bytes=vmem_limit,
            ),
            cost_estimate=cost,
        )(x, wp, bp)

    return out[:, :n_class] if n_pad != n_class else out


if __name__ == "__main__":
    key = jax.random.PRNGKey(0)

    # --- Case 1: module-sized problem (batch=8, input_size=32, n_class=1) ---
    B, D, n_class = 8, 32, 1
    kx, kw, kb = jax.random.split(key, 3)
    bound = 1.0 / jnp.sqrt(jnp.float32(D))
    weight = jax.random.uniform(kw, (n_class, D), jnp.float32, -bound, bound)
    bias = jax.random.uniform(kb, (n_class,), jnp.float32, -bound, bound)
    x = jax.random.normal(kx, (B, D), jnp.float32)

    y = logistic_reg_forward(x, weight, bias)
    jax.block_until_ready(y)
    y_ref = x @ weight.T + bias
    assert y.shape == (B, n_class)
    assert jnp.allclose(y, y_ref, atol=1e-5, rtol=1e-5), "mismatch vs reference (single-k)"

    # --- Case 2: exercise multi-k + ragged batch / ragged D tiles -----------
    B2, D2, n_class2 = 20, 300, 3
    k2 = jax.random.split(key, 6)
    bound2 = 1.0 / jnp.sqrt(jnp.float32(D2))
    weight2 = jax.random.uniform(k2[3], (n_class2, D2), jnp.float32, -bound2, bound2)
    bias2 = jax.random.uniform(k2[4], (n_class2,), jnp.float32, -bound2, bound2)
    x2 = jax.random.normal(k2[5], (B2, D2), jnp.float32)

    y2 = logistic_reg_forward(x2, weight2, bias2, tile_d=128)   # n_k=3, ragged last tile
    jax.block_until_ready(y2)
    y2_ref = x2 @ weight2.T + bias2
    assert y2.shape == (B2, n_class2)
    # Looser tolerance: MXU bf16-pass rounding on the longer f32 reduction.
    assert jnp.allclose(y2, y2_ref, atol=1e-2, rtol=1e-2), "mismatch vs reference (multi-k)"

    print("KERNEL_OK")
</pallas_src>

<mosaic_0001>
module attributes {stable_mosaic.version = 11 : i64} {
  func.func @_linear_kernel_single(%arg0: i32, %arg1: memref<8x32xf32, #tpu.memory_space<vmem>>, %arg2: memref<8x32xf32, #tpu.memory_space<vmem>>, %arg3: memref<1x8xf32, #tpu.memory_space<vmem>>, %arg4: memref<8x8xf32, #tpu.memory_space<vmem>>) attributes {dimension_semantics = [#tpu.dimension_semantics<parallel>], iteration_bounds = array<i64: 1>, scalar_prefetch = 0 : i64, scratch_operands = 0 : i64, tpu.core_type = #tpu.core_type<tc>, window_params = [{transform_indices = @transform_0, window_bounds = array<i64: 8, 32>}, {pipeline_mode = #tpu.pipeline_mode<synchronous>, transform_indices = @transform_1, window_bounds = array<i64: 8, 32>}, {pipeline_mode = #tpu.pipeline_mode<synchronous>, transform_indices = @transform_2, window_bounds = array<i64: 1, 8>}, {transform_indices = @transform_3, window_bounds = array<i64: 8, 8>}]} {
    %c0 = arith.constant 0 : index
    %c0_0 = arith.constant 0 : index
    %0 = vector.load %arg1[%c0, %c0_0] : memref<8x32xf32, #tpu.memory_space<vmem>>, vector<8x32xf32>
    %c0_1 = arith.constant 0 : index
    %c0_2 = arith.constant 0 : index
    %1 = vector.load %arg2[%c0_1, %c0_2] : memref<8x32xf32, #tpu.memory_space<vmem>>, vector<8x32xf32>
    %cst = arith.constant dense<0.000000e+00> : vector<8x8xf32>
    %2 = tpu.matmul %0, %1, %cst {dimension_numbers = #tpu.dot_dimension_numbers<[1], [1], [0], [0], [0, 0, 1, 0], [], []>} : vector<8x32xf32>, vector<8x32xf32>, vector<8x8xf32> -> vector<8x8xf32>
    %c0_3 = arith.constant 0 : index
    %c0_4 = arith.constant 0 : index
    %3 = vector.load %arg3[%c0_3, %c0_4] : memref<1x8xf32, #tpu.memory_space<vmem>>, vector<1x8xf32>
    %4 = vector.broadcast %3 : vector<1x8xf32> to vector<8x8xf32>
    %5 = arith.addf %2, %4 : vector<8x8xf32>
    %c0_5 = arith.constant 0 : index
    %c0_6 = arith.constant 0 : index
    %6 = vector.load %arg4[%c0_5, %c0_6] : memref<8x8xf32, #tpu.memory_space<vmem>>, vector<8x8xf32>
    tpu.vector_store %arg4[%c0_5, %c0_6], %5 {strides = array<i32>} : memref<8x8xf32, #tpu.memory_space<vmem>>, vector<8x8xf32>,
    return
  }
  func.func @transform_0(%arg0: i32) -> (i32, i32) {
    %c0_i32 = arith.constant 0 : i32
    %c0_i32_0 = arith.constant 0 : i32
    return %arg0, %c0_i32 : i32, i32
  }
  func.func @transform_1(%arg0: i32) -> (i32, i32) {
    %c0_i32 = arith.constant 0 : i32
    %c0_i32_0 = arith.constant 0 : i32
    %c0_i32_1 = arith.constant 0 : i32
    return %c0_i32, %c0_i32_0 : i32, i32
  }
  func.func @transform_2(%arg0: i32) -> (i32, i32) {
    %c0_i32 = arith.constant 0 : i32
    %c0_i32_0 = arith.constant 0 : i32
    %c0_i32_1 = arith.constant 0 : i32
    return %c0_i32, %c0_i32_0 : i32, i32
  }
  func.func @transform_3(%arg0: i32) -> (i32, i32) {
    %c0_i32 = arith.constant 0 : i32
    %c0_i32_0 = arith.constant 0 : i32
    return %arg0, %c0_i32 : i32, i32
  }
}

</mosaic_0001>

<llo_original>
// kernel: tpu_custom_call.1
$region0: #{tpu_custom_call.1}
  #allocation0 [shape = 'u32[]', space=smem, size = 0x4, offset = 0x4, fixed_abs, tag = 'smem constant byte address 0x4 - core index']
  #allocation1 [shape = 'u32[144,128]{1,0:T(1,128)}', space=vmem, size = 0x12000, scoped, tag = 'internal scratch']
  %s0 = inlined_call_operand.hbm [shape: f32[8,32], index: 0, kind: input, shape index: {}]
  %s1 = inlined_call_operand.hbm [shape: f32[8,32], index: 1, kind: input, shape index: {}]
  %s2 = inlined_call_operand.vmem [shape: f32[1,8], index: 2, kind: input, shape index: {}]
  %s3 = inlined_call_operand.hbm [shape: f32[8,8], index: 3, kind: output, shape index: {}]
  %s4 = sld [smem:[#allocation0]]
  $region30: #{tpu_custom_call.1} parent=0
    _
  %s6 = ssub.s32 1, %s4
  %s7 = scalar_select 0, %s6, %s4
  $region1: #{tpu_custom_call.1} parent=0
    #allocation2 [shape = 'u8[4096]{0}', space=vmem, size = 0x1000, scoped, tag = 'input window, operand 0, single buffered']
    #allocation3 [shape = 's32[1]{0}', space=sflag, size = 0x4, scoped, tag = 'scoped memory for tpu_custom_call.1']
    #allocation4 [shape = 's32[1]{0}', space=sflag, size = 0x4, scoped, tag = 'scoped memory for tpu_custom_call.1']
    #allocation5 [shape = 'u8[4096]{0}', space=vmem, size = 0x1000, scoped, tag = 'input window, operand 1, single buffered']
    #allocation6 [shape = 's32[1]{0}', space=sflag, size = 0x4, scoped, tag = 'scoped memory for tpu_custom_call.1']
    #allocation7 [shape = 'u8[4096]{0}', space=vmem, size = 0x1000, scoped, tag = 'output window, operand 0, single buffered']
    %8 = vsyncpa [#allocation3], 0
    %9 = vsyncpa [#allocation6], 0
    %10 = vsyncpa [#allocation4], 0
    // Predicated region
    $region2: #{tpu_custom_call.1} parent=1 // pred_check
      _
    $region3: #{tpu_custom_call.1} parent=1 // pred_check_branch
      %12 = sbr.rel (0) target = $region5
    $region4: #{tpu_custom_call.1} parent=1 // pred_region
      %s14 = ssub.s32 128, 128
      %15 = vsyncadd [#allocation3], %s14
      %s17 = sshll.u32 [#allocation2], 4
      %s18 = int_to_ptr.vmem [resolvable:$true] %s17
      %20 = dma.hbm_to_vmem [thread:$0]  %s0, 128, %s18, [#allocation3]
    $region5: #{tpu_custom_call.1} parent=1 // pred_fallthru
      _
    // Predicated region
    $region6: #{tpu_custom_call.1} parent=1 // pred_check
      _
    $region7: #{tpu_custom_call.1} parent=1 // pred_check_branch
      %22 = sbr.rel (0) target = $region9
    $region8: #{tpu_custom_call.1} parent=1 // pred_region
      %s24 = ssub.s32 128, 128
      %25 = vsyncadd [#allocation6], %s24
      %s27 = sshll.u32 [#allocation5], 4
      %s28 = int_to_ptr.vmem [resolvable:$true] %s27
      %30 = dma.hbm_to_vmem [thread:$0]  %s1, 128, %s28, [#allocation6]
    $region9: #{tpu_custom_call.1} parent=1 // pred_fallthru
      _
    // Predicated region
    $region10: #{tpu_custom_call.1} parent=1 // pred_check
      _
    $region11: #{tpu_custom_call.1} parent=1 // pred_check_branch
      %32 = sbr.rel (0) target = $region13
    $region12: #{tpu_custom_call.1} parent=1 // pred_region
      _
    $region13: #{tpu_custom_call.1} parent=1 // pred_fallthru
      _
    // Predicated region
    $region14: #{tpu_custom_call.1} parent=1 // pred_check
      _
    $region15: #{tpu_custom_call.1} parent=1 // pred_check_branch
      %34 = sbr.rel (0) target = $region17
    $region16: #{tpu_custom_call.1} parent=1 // pred_region
      %35 = dma.done [#allocation3], 128
    $region17: #{tpu_custom_call.1} parent=1 // pred_fallthru
      _
    // Predicated region
    $region18: #{tpu_custom_call.1} parent=1 // pred_check
      _
    $region19: #{tpu_custom_call.1} parent=1 // pred_check_branch
      %37 = sbr.rel (0) target = $region21
    $region20: #{tpu_custom_call.1} parent=1 // pred_region
      %38 = dma.done [#allocation6], 128
    $region21: #{tpu_custom_call.1} parent=1 // pred_fallthru
      _
    %v39 = vld [vmem:[#allocation2] sm:$0xff]
    %v40 = vld [vmem:[#allocation5] sm:$0xff]
    %v41 = vld [vmem:[%s2] sm:$0x1]
    %v43 = vlaneseq
    %v44 = vshrl.u32 %v43, 7
    %v45 = vsub.s32 0, %v44
    %v46 = vrot.slane %v41, %v45
    %vm48 = vcmask 261120
    %v50 = vsel %vm48, %v39, 0
    %v53 = vsel %vm48, %v40, 0
    %55 = vmatprep.subr.mxu0 0.0
    %56 = vmatpush1.xpose.msra.mxu0 %v53
    %57 = vmatprep.subr.mxu0 0.0
    %58 = vmatpush1.xpose.msra.mxu0 0.0
    %59 = vmatprep.subr.mxu0 0.0
    %60 = vmatpush1.xpose.msra.mxu0 0.0
    %61 = vmatprep.subr.mxu0 0.0
    %62 = vmatpush1.xpose.msra.mxu0 0.0
    %63 = vmatprep.subr.mxu0 0.0
    %64 = vmatpush1.xpose.msra.mxu0 0.0
    %65 = vmatprep.subr.mxu0 0.0
    %66 = vmatpush1.xpose.msra.mxu0 0.0
    %67 = vmatprep.subr.mxu0 0.0
    %68 = vmatpush1.xpose.msra.mxu0 0.0
    %69 = vmatprep.subr.mxu0 0.0
    %70 = vmatpush1.xpose.msra.mxu0 0.0
    %71 = vmatprep.subr.mxu0 0.0
    %72 = vmatpush1.xpose.msra.mxu0 0.0
    %73 = vmatprep.subr.mxu0 0.0
    %74 = vmatpush1.xpose.msra.mxu0 0.0
    %75 = vmatprep.subr.mxu0 0.0
    %76 = vmatpush1.xpose.msra.mxu0 0.0
    %77 = vmatprep.subr.mxu0 0.0
    %78 = vmatpush1.xpose.msra.mxu0 0.0
    %79 = vmatprep.subr.mxu0 0.0
    %80 = vmatpush1.xpose.msra.mxu0 0.0
    %81 = vmatprep.subr.mxu0 0.0
    %82 = vmatpush1.xpose.msra.mxu0 0.0
    %83 = vmatprep.subr.mxu0 0.0
    %84 = vmatpush1.xpose.msra.mxu0 0.0
    %85 = vmatprep.subr.mxu0 0.0
    %86 = vmatpush1.xpose.msra.mxu0 0.0
    %87 = vmatprep.subr.mxu0 0.0
    %88 = vmatpush1.xpose.msra.mxu0 0.0
    %89 = vmatprep.subr.mxu0 0.0
    %90 = vmatpush1.xpose.msra.mxu0 0.0
    %91 = vmatprep.subr.mxu0 0.0
    %92 = vmatpush1.xpose.msra.mxu0 0.0
    %93 = vmatprep.subr.mxu0 0.0
    %94 = vmatpush1.xpose.msra.mxu0 0.0
    %95 = vmatprep.subr.mxu0 0.0
    %96 = vmatpush1.xpose.msra.mxu0 0.0
    %97 = vmatprep.subr.mxu0 0.0
    %98 = vmatpush1.xpose.msra.mxu0 0.0
    %99 = vmatprep.subr.mxu0 0.0
    %100 = vmatpush1.xpose.msra.mxu0 0.0
    %101 = vmatprep.subr.mxu0 0.0
    %102 = vmatpush1.xpose.msra.mxu0 0.0
    %103 = vmatprep.subr.mxu0 0.0
    %104 = vmatpush1.xpose.msra.mxu0 0.0
    %105 = vmatprep.subr.mxu0 0.0
    %106 = vmatpush1.xpose.msra.mxu0 0.0
    %107 = vmatprep.subr.mxu0 0.0
    %108 = vmatpush1.xpose.msra.mxu0 0.0
    %109 = vmatprep.subr.mxu0 0.0
    %110 = vmatpush1.xpose.msra.mxu0 0.0
    %111 = vmatprep.subr.mxu0 0.0
    %112 = vmatpush1.xpose.msra.mxu0 0.0
    %113 = vmatprep.subr.mxu0 0.0
    %114 = vmatpush1.xpose.msra.mxu0 0.0
    %115 = vmatprep.subr.mxu0 0.0
    %116 = vmatpush1.xpose.msra.mxu0 0.0
    %117 = vmatprep.subr.mxu0 0.0
    %118 = vmatpush1.xpose.msra.mxu0 0.0
    %119 = vmatprep.mubr.f32.mxu0 0.0
    %120 = vmatmul.mubr.f32.gmra.mrb[0].mxu0 %v50
    %v121 = vpop.f32.mrb[0].mxu0
    %v122 = vadd.f32 %v46, %v121
    %v123 = vpop.f32.mrb[0].mxu0
    %124 = vdwg.mxu0
    %vm125 = vcmask 64512
    %126 = vst.msk [vmem:[#allocation7] sm:$0xff] %vm125, %v122
    // Predicated region
    $region22: #{tpu_custom_call.1} parent=1 // pred_check
      _
    $region23: #{tpu_custom_call.1} parent=1 // pred_check_branch
      %128 = sbr.rel (0) target = $region25
    $region24: #{tpu_custom_call.1} parent=1 // pred_region
      %s130 = ssub.s32 128, 128
      %131 = vsyncadd [#allocation4], %s130
      %s133 = sshll.u32 [#allocation7], 4
      %s134 = int_to_ptr.vmem [resolvable:$true] %s133
      %136 = dma.vmem_to_hbm [thread:$0]  %s134, 128, %s3, [#allocation4]
    $region25: #{tpu_custom_call.1} parent=1 // pred_fallthru
      _
    // Predicated region
    $region26: #{tpu_custom_call.1} parent=1 // pred_check
      _
    $region27: #{tpu_custom_call.1} parent=1 // pred_check_branch
      %138 = sbr.rel (0) target = $region29
    $region28: #{tpu_custom_call.1} parent=1 // pred_region
      %139 = dma.done [#allocation4], 128
    $region29: #{tpu_custom_call.1} parent=1 // pred_fallthru
      _
    %140 = vsyncpa [#allocation3], 1
    %141 = vsyncpa [#allocation6], 1
    %142 = vsyncpa [#allocation4], 1

</llo_original>
